<compile_context>
chip_gen: v7x
topology: tpu7x:2x2x1
jax: 0.10.0
libtpu: 0.0.40
codegen_flags: <defaults>
</compile_context>

<pallas_src>
import functools

import jax
import jax.numpy as jnp
from jax.experimental import pallas as pl
from jax.experimental.pallas import tpu as pltpu


# ---------------------------------------------------------------------------
# Pallas kernel: dilated conv (k deep-K MXU matmuls) + BN scale/shift + ReLU
# ---------------------------------------------------------------------------

def _aspp_branch_kernel(x_ref, w_ref, s_ref, b_ref, o_ref, acc_ref, *,
                        k, d, h_out, w_out):
    """One (image, Cout-tile) per grid step.

    x_ref:   (Hp, W_out, k*Cin)   bf16  kw-tap-expanded, H-padded image
    w_ref:   (k, k*Cin, Ct)       bf16  conv weights, kw folded into K
    s_ref:   (1, Ct)              f32   BN scale  gamma / sqrt(var + eps)
    b_ref:   (1, Ct)              f32   BN shift  beta - mean * scale
    o_ref:   (h_out*w_out, Ct)    out dtype (bf16)
    acc_ref: (h_out*w_out, Ct)    f32   VMEM accumulator scratch
    """
    kcin = w_ref.shape[1]

    # Unrolled loop over the k H-taps.  The slice is on the leading
    # (untiled) axis and W_out is a full, 8-aligned sublane axis, so the
    # reshape is layout-preserving.  Accumulate into VMEM, not vregs.
    for t in range(k):
        xt = x_ref[t * d:t * d + h_out].reshape(h_out * w_out, kcin)
        part = jnp.dot(xt, w_ref[t], preferred_element_type=jnp.float32)
        if t == 0:
            acc_ref[...] = part
        else:
            acc_ref[...] += part

    # f32 epilogue (scale, shift, ReLU); cast only at the final store.
    y = acc_ref[...] * s_ref[...] + b_ref[...]
    o_ref[...] = jnp.maximum(y, 0.0).astype(o_ref.dtype)


# ---------------------------------------------------------------------------
# NHWC core wrapper (use this directly inside a full channels-last ASPP)
# ---------------------------------------------------------------------------

def aspp_branch_nhwc(x_nhwc, w_oihw, gamma, beta, running_mean, running_var,
                     *, kernel_size, padding, dilation, eps=1e-5,
                     out_dtype=jnp.bfloat16):
    N, H, W, Cin = x_nhwc.shape
    Cout = w_oihw.shape[0]
    k, p, d = kernel_size, padding, dilation

    Hp, Wp = H + 2 * p, W + 2 * p
    H_out = Hp - d * (k - 1)        # stride=1 only (true for _ASPPModule)
    W_out = Wp - d * (k - 1)

    # Eval-mode BN as per-channel f32 scale/shift applied in the epilogue.
    scale = (gamma / jnp.sqrt(running_var + eps)).astype(jnp.float32)
    shift = (beta - running_mean * scale).astype(jnp.float32)
    scale = scale.reshape(1, Cout)
    shift = shift.reshape(1, Cout)

    # Weights: (Cout, Cin, kh, kw) -> (kh, kw*Cin, Cout).  The kw taps are
    # concatenated into the contraction axis: K = k*Cin per matmul.
    w = jnp.transpose(w_oihw, (2, 3, 1, 0)).reshape(k, k * Cin, Cout)
    w = w.astype(jnp.bfloat16)

    # Input: pad spatially once, then pre-expand the kw taps (k shifted
    # W-windows concatenated along channels) so the kernel only slices the
    # untiled H axis.
    x = x_nhwc.astype(jnp.bfloat16)
    if p:
        x = jnp.pad(x, ((0, 0), (p, p), (p, p), (0, 0)))
    if k > 1:
        x = jnp.concatenate(
            [x[:, :, kw * d:kw * d + W_out, :] for kw in range(k)], axis=-1)
    # x: (N, Hp, W_out, k*Cin)

    tile_cout = 128 if Cout % 128 == 0 else Cout
    n_ct = Cout // tile_cout

    kernel = functools.partial(_aspp_branch_kernel, k=k, d=d,
                               h_out=H_out, w_out=W_out)

    flops = 2 * N * H_out * W_out * k * k * Cin * Cout
    bytes_accessed = (x.size * x.dtype.itemsize
                      + w.size * w.dtype.itemsize
                      + (scale.size + shift.size) * 4
                      + N * H_out * W_out * Cout
                      * jnp.dtype(out_dtype).itemsize)

    out = pl.pallas_call(
        kernel,
        out_shape=jax.ShapeDtypeStruct((N, H_out * W_out, Cout), out_dtype),
        grid=(N, n_ct),
        in_specs=[
            pl.BlockSpec((None, Hp, W_out, k * Cin),
                         lambda n, j: (n, 0, 0, 0)),
            pl.BlockSpec((k, k * Cin, tile_cout), lambda n, j: (0, 0, j)),
            pl.BlockSpec((1, tile_cout), lambda n, j: (0, j)),
            pl.BlockSpec((1, tile_cout), lambda n, j: (0, j)),
        ],
        out_specs=pl.BlockSpec((None, H_out * W_out, tile_cout),
                               lambda n, j: (n, 0, j)),
        scratch_shapes=[pltpu.VMEM((H_out * W_out, tile_cout), jnp.float32)],
        compiler_params=pltpu.CompilerParams(
            dimension_semantics=("parallel", "parallel")),
        cost_estimate=pl.CostEstimate(flops=int(flops), transcendentals=0,
                                      bytes_accessed=int(bytes_accessed)),
    )(x, w, scale, shift)

    return out.reshape(N, H_out, W_out, Cout)


# ---------------------------------------------------------------------------
# Module-level adapter (NCHW f32 in / out, matching the PyTorch module)
# ---------------------------------------------------------------------------

@functools.partial(jax.jit,
                   static_argnames=("kernel_size", "padding", "dilation"))
def aspp_module_forward(x, weight, gamma, beta, running_mean, running_var,
                        *, kernel_size, padding, dilation):
    # Layout conversion happens exactly once at the module boundary; a full
    # ASPP should keep NHWC end-to-end and call aspp_branch_nhwc directly.
    x_nhwc = jnp.transpose(x, (0, 2, 3, 1))
    y = aspp_branch_nhwc(x_nhwc, weight, gamma, beta, running_mean,
                         running_var, kernel_size=kernel_size,
                         padding=padding, dilation=dilation)
    return jnp.transpose(y, (0, 3, 1, 2)).astype(jnp.float32)


# ---------------------------------------------------------------------------
# Pure-JAX reference (for a tolerance check)
# ---------------------------------------------------------------------------

def aspp_module_reference(x, weight, gamma, beta, running_mean, running_var,
                          *, kernel_size, padding, dilation, eps=1e-5):
    del kernel_size
    y = jax.lax.conv_general_dilated(
        x.astype(jnp.float32), weight.astype(jnp.float32),
        window_strides=(1, 1),
        padding=((padding, padding), (padding, padding)),
        rhs_dilation=(dilation, dilation),
        dimension_numbers=("NCHW", "OIHW", "NCHW"))
    scale = gamma / jnp.sqrt(running_var + eps)
    shift = beta - running_mean * scale
    y = y * scale[None, :, None, None] + shift[None, :, None, None]
    return jnp.maximum(y, 0.0)


# ---------------------------------------------------------------------------
# Main
# ---------------------------------------------------------------------------

if __name__ == "__main__":
    # One ASPP branch with inplanes=128, planes=256 on a 2 x 128 x 16 x 16
    # feature map.
    N, Cin, H, W = 2, 128, 16, 16
    Cout = 256

    key = jax.random.PRNGKey(0)
    kx, kw1, kw3, kg, kb, km = jax.random.split(key, 6)

    x = jax.random.normal(kx, (N, Cin, H, W), jnp.float32)
    gamma = 1.0 + 0.1 * jax.random.normal(kg, (Cout,), jnp.float32)
    beta = 0.1 * jax.random.normal(kb, (Cout,), jnp.float32)
    running_mean = 0.1 * jax.random.normal(km, (Cout,), jnp.float32)
    running_var = jnp.ones((Cout,), jnp.float32)

    # The two flavours _ASPPModule is instantiated with inside ASPP:
    #   (kernel_size=1, padding=0, dilation=1) and
    #   (kernel_size=3, padding=d, dilation=d).
    configs = [
        (1, 0, 1, 0.05 * jax.random.normal(kw1, (Cout, Cin, 1, 1), jnp.float32)),
        (3, 6, 6, 0.05 * jax.random.normal(kw3, (Cout, Cin, 3, 3), jnp.float32)),
    ]

    for kernel_size, padding, dilation, weight in configs:
        out = aspp_module_forward(x, weight, gamma, beta, running_mean,
                                  running_var, kernel_size=kernel_size,
                                  padding=padding, dilation=dilation)
        out = jax.block_until_ready(out)
        assert out.shape == (N, Cout, H, W), out.shape
        assert bool(jnp.all(jnp.isfinite(out)))
        assert bool(jnp.all(out >= 0.0))

        ref = aspp_module_reference(x, weight, gamma, beta, running_mean,
                                    running_var, kernel_size=kernel_size,
                                    padding=padding, dilation=dilation)
        max_err = float(jnp.max(jnp.abs(out - ref)))
        tol = 3e-2 * float(jnp.max(jnp.abs(ref))) + 1e-2
        assert max_err < tol, f"max_err={max_err} tol={tol}"

    print("KERNEL_OK")
</pallas_src>

<mosaic_0001>
module attributes {stable_mosaic.version = 11 : i64} {
  func.func @_aspp_branch_kernel(%arg0: i32, %arg1: i32, %arg2: memref<1x16x16x128xbf16, #tpu.memory_space<vmem>>, %arg3: memref<1x128x128xbf16, #tpu.memory_space<vmem>>, %arg4: memref<1x128xf32, #tpu.memory_space<vmem>>, %arg5: memref<1x128xf32, #tpu.memory_space<vmem>>, %arg6: memref<1x256x128xbf16, #tpu.memory_space<vmem>>, %arg7: memref<256x128xf32, #tpu.memory_space<vmem>>) attributes {dimension_semantics = [#tpu.dimension_semantics<parallel>, #tpu.dimension_semantics<parallel>], iteration_bounds = array<i64: 2, 2>, scalar_prefetch = 0 : i64, scratch_operands = 1 : i64, tpu.core_type = #tpu.core_type<tc>, window_params = [{transform_indices = @transform_0, window_bounds = array<i64: 1, 16, 16, 128>}, {transform_indices = @transform_1, window_bounds = array<i64: 1, 128, 128>}, {transform_indices = @transform_2, window_bounds = array<i64: 1, 128>}, {transform_indices = @transform_3, window_bounds = array<i64: 1, 128>}, {transform_indices = @transform_4, window_bounds = array<i64: 1, 256, 128>}]} {
    %c0 = arith.constant 0 : index
    %c0_0 = arith.constant 0 : index
    %c0_1 = arith.constant 0 : index
    %c0_2 = arith.constant 0 : index
    %0 = vector.load %arg2[%c0, %c0_0, %c0_1, %c0_2] : memref<1x16x16x128xbf16, #tpu.memory_space<vmem>>, vector<1x16x16x128xbf16>
    %1 = vector.shape_cast %0 : vector<1x16x16x128xbf16> to vector<16x16x128xbf16>
    %2 = vector.shape_cast %1 : vector<16x16x128xbf16> to vector<256x128xbf16>
    %c0_3 = arith.constant 0 : index
    %c0_4 = arith.constant 0 : index
    %c0_5 = arith.constant 0 : index
    %3 = vector.load %arg3[%c0_3, %c0_4, %c0_5] : memref<1x128x128xbf16, #tpu.memory_space<vmem>>, vector<1x128x128xbf16>
    %4 = vector.shape_cast %3 : vector<1x128x128xbf16> to vector<128x128xbf16>
    %cst = arith.constant dense<0.000000e+00> : vector<256x128xf32>
    %5 = tpu.matmul %2, %4, %cst {dimension_numbers = #tpu.dot_dimension_numbers<[1], [0], [0], [1], [0, 0, 1, 1], [], []>} : vector<256x128xbf16>, vector<128x128xbf16>, vector<256x128xf32> -> vector<256x128xf32>
    %c0_6 = arith.constant 0 : index
    %c0_7 = arith.constant 0 : index
    %6 = vector.load %arg7[%c0_6, %c0_7] : memref<256x128xf32, #tpu.memory_space<vmem>>, vector<256x128xf32>
    tpu.vector_store %arg7[%c0_6, %c0_7], %5 {strides = array<i32>} : memref<256x128xf32, #tpu.memory_space<vmem>>, vector<256x128xf32>,
    %c0_8 = arith.constant 0 : index
    %c0_9 = arith.constant 0 : index
    %7 = vector.load %arg7[%c0_8, %c0_9] : memref<256x128xf32, #tpu.memory_space<vmem>>, vector<256x128xf32>
    %c0_10 = arith.constant 0 : index
    %c0_11 = arith.constant 0 : index
    %8 = vector.load %arg4[%c0_10, %c0_11] : memref<1x128xf32, #tpu.memory_space<vmem>>, vector<1x128xf32>
    %9 = vector.broadcast %8 : vector<1x128xf32> to vector<256x128xf32>
    %10 = arith.mulf %7, %9 : vector<256x128xf32>
    %c0_12 = arith.constant 0 : index
    %c0_13 = arith.constant 0 : index
    %11 = vector.load %arg5[%c0_12, %c0_13] : memref<1x128xf32, #tpu.memory_space<vmem>>, vector<1x128xf32>
    %12 = vector.broadcast %11 : vector<1x128xf32> to vector<256x128xf32>
    %13 = arith.addf %10, %12 : vector<256x128xf32>
    %cst_14 = arith.constant 0.000000e+00 : f32
    %14 = vector.broadcast %cst_14 : f32 to vector<256x128xf32>
    %15 = arith.maximumf %13, %14 : vector<256x128xf32>
    %16 = arith.truncf %15 : vector<256x128xf32> to vector<256x128xbf16>
    %c0_15 = arith.constant 0 : index
    %c0_16 = arith.constant 0 : index
    %c0_17 = arith.constant 0 : index
    %17 = vector.load %arg6[%c0_15, %c0_16, %c0_17] : memref<1x256x128xbf16, #tpu.memory_space<vmem>>, vector<1x256x128xbf16>
    %18 = vector.shape_cast %17 : vector<1x256x128xbf16> to vector<256x128xbf16>
    %19 = vector.shape_cast %16 : vector<256x128xbf16> to vector<1x256x128xbf16>
    tpu.vector_store %arg6[%c0_15, %c0_16, %c0_17], %19 {strides = array<i32>} : memref<1x256x128xbf16, #tpu.memory_space<vmem>>, vector<1x256x128xbf16>,
    return
  }
  func.func @transform_0(%arg0: i32, %arg1: i32) -> (i32, i32, i32, i32) {
    %c0_i32 = arith.constant 0 : i32
    %c0_i32_0 = arith.constant 0 : i32
    %c0_i32_1 = arith.constant 0 : i32
    %c0_i32_2 = arith.constant 0 : i32
    return %arg0, %c0_i32, %c0_i32_0, %c0_i32_1 : i32, i32, i32, i32
  }
  func.func @transform_1(%arg0: i32, %arg1: i32) -> (i32, i32, i32) {
    %c0_i32 = arith.constant 0 : i32
    %c0_i32_0 = arith.constant 0 : i32
    %c0_i32_1 = arith.constant 0 : i32
    return %c0_i32, %c0_i32_0, %arg1 : i32, i32, i32
  }
  func.func @transform_2(%arg0: i32, %arg1: i32) -> (i32, i32) {
    %c0_i32 = arith.constant 0 : i32
    %c0_i32_0 = arith.constant 0 : i32
    return %c0_i32, %arg1 : i32, i32
  }
  func.func @transform_3(%arg0: i32, %arg1: i32) -> (i32, i32) {
    %c0_i32 = arith.constant 0 : i32
    %c0_i32_0 = arith.constant 0 : i32
    return %c0_i32, %arg1 : i32, i32
  }
  func.func @transform_4(%arg0: i32, %arg1: i32) -> (i32, i32, i32) {
    %c0_i32 = arith.constant 0 : i32
    %c0_i32_0 = arith.constant 0 : i32
    return %arg0, %c0_i32, %arg1 : i32, i32, i32
  }
}

</mosaic_0001>

<llo_original>
// kernel: aspp_module_forward.1
$region0: #{aspp_module_forward.1}
  #allocation0 [shape = 'u32[]', space=smem, size = 0x4, offset = 0x4, fixed_abs, tag = 'smem constant byte address 0x4 - core index']
  #allocation1 [shape = 'u32[144,128]{1,0:T(1,128)}', space=vmem, size = 0x12000, scoped, tag = 'internal scratch']
  #allocation2 [shape = 'f32[256,128]{1,0:T(8,128)}', space=vmem, size = 0x20000, scoped, tag = 'scratch operand']
  %s0 = inlined_call_operand.vmem [shape: bf16[2,16,16,128], index: 0, kind: input, shape index: {}]
  %s1 = inlined_call_operand.vmem [shape: bf16[1,128,256], index: 1, kind: input, shape index: {}]
  %s2 = inlined_call_operand.vmem [shape: f32[1,256], index: 2, kind: input, shape index: {}]
  %s3 = inlined_call_operand.vmem [shape: f32[1,256], index: 3, kind: input, shape index: {}]
  %s4 = inlined_call_operand.vmem [shape: bf16[2,256,256], index: 4, kind: output, shape index: {}]
  %s5 = sld [smem:[#allocation0]]
  $region127: #{aspp_module_forward.1} parent=0
    _
  %s7 = ssub.s32 1, %s5
  %s8 = scalar_select 0, %s7, %s5
  $region1: #{aspp_module_forward.1} parent=0
    #allocation3 [shape = 'u8[65536]{0}', space=vmem, size = 0x10000, scoped, tag = 'input window, operand 1']
    #allocation4 [shape = 'u8[131072]{0}', space=vmem, size = 0x20000, scoped, tag = 'output window, operand 0']
    loop: start=0, step=1, limit=6
    $region2: #{aspp_module_forward.1} parent=1 // loop_pre_header
      _
    $region3: #{aspp_module_forward.1} parent=1 // loop_header
      %s10 = sphi 0, %s14
      %p11 = scmp.ge.s32.totalorder %s10, 6
      %s17 = sphi 0, %s29
      %s18 = sphi 0, %s25
      %s19 = sphi 0, %s17
      %s20 = sphi 0, %s18
      %s21 = sphi 0, %s19
      %s22 = sphi 0, %s20
      %s32 = sphi 0, %s34
      %s35 = sphi 0, %s32
      %s36 = sphi 0, %s35
      %s52 = sphi 0, %s36
      %s58 = sphi 0, %s60
      %s61 = sphi 0, %s58
      %s62 = sphi 0, %s61
      %s78 = sphi 0, %s62
      %s84 = sphi 0, %s86
      %s87 = sphi 0, %s84
      %s88 = sphi 0, %s87
      %s104 = sphi 0, %s88
      %s110 = sphi 0, %s112
      %s113 = sphi 0, %s110
      %s114 = sphi 0, %s113
      %s130 = sphi 0, %s114
      %s138 = sphi 0, %s140
      %s141 = sphi 0, %s138
      %s142 = sphi 0, %s141
      %s158 = sphi 0, %s142
    $region4: #{aspp_module_forward.1} parent=1 // loop_header_branch
      %13 = sbr.rel (%p11) target = $region8
    $region5: #{aspp_module_forward.1} parent=1 // loop_body
      %s15 = ssub.s32 %s10, 1
      %s16 = ssub.s32 %s10, 2
      %s23 = sadd.s32 1, %s18
      %p24 = scmp.ge.s32.totalorder %s23, 2
      %s25 = scalar_select %p24, 0, %s23
      %s26 = sadd.s32 1, %s17
      %s27 = scalar_select %p24, %s26, %s17
      %p28 = scmp.ge.s32.totalorder %s27, 2
      %s29 = scalar_select %p28, 0, %s27
      %s30 = ssub.s32 %s17, %s29
      %p31 = scmp.eq.s32.totalorder %s30, 0
      %s33 = sadd.s32 %s32, 1
      %s34 = scalar_select %p31, %s32, %s33
      %p37 = pneg %p31
      %p38 = scmp.eq.s32.totalorder %s10, 3
      %p39 = por %p37, %p38
      %p40 = scmp.ne.s32.totalorder %s32, %s35
      %p41 = scmp.eq.s32.totalorder %s10, 0
      %p42 = por %p40, %p41
      %p43 = scmp.ne.s32.totalorder %s32, %s35
      %p44 = scmp.eq.s32.totalorder %s15, 3
      %p45 = por %p43, %p44
      %p46 = scmp.ne.s32.totalorder %s35, %s36
      %p47 = scmp.eq.s32.totalorder %s15, 0
      %p48 = por %p46, %p47
      %p49 = scmp.ne.s32.totalorder %s35, %s36
      %p50 = scmp.eq.s32.totalorder %s16, 3
      %p51 = por %p49, %p50
      %p53 = scmp.ne.s32.totalorder %s36, %s52
      %p54 = scmp.eq.s32.totalorder %s16, 0
      %p55 = por %p53, %p54
      %s56 = ssub.s32 %s18, %s25
      %p57 = scmp.eq.s32.totalorder %s56, 0
      %s59 = sadd.s32 %s58, 1
      %s60 = scalar_select %p57, %s58, %s59
      %p63 = pneg %p57
      %p64 = scmp.eq.s32.totalorder %s10, 3
      %p65 = por %p63, %p64
      %p66 = scmp.ne.s32.totalorder %s58, %s61
      %p67 = scmp.eq.s32.totalorder %s10, 0
      %p68 = por %p66, %p67
      %p69 = scmp.ne.s32.totalorder %s58, %s61
      %p70 = scmp.eq.s32.totalorder %s15, 3
      %p71 = por %p69, %p70
      %p72 = scmp.ne.s32.totalorder %s61, %s62
      %p73 = scmp.eq.s32.totalorder %s15, 0
      %p74 = por %p72, %p73
      %p75 = scmp.ne.s32.totalorder %s61, %s62
      %p76 = scmp.eq.s32.totalorder %s16, 3
      %p77 = por %p75, %p76
      %p79 = scmp.ne.s32.totalorder %s62, %s78
      %p80 = scmp.eq.s32.totalorder %s16, 0
      %p81 = por %p79, %p80
      %s82 = ssub.s32 %s18, %s25
      %p83 = scmp.eq.s32.totalorder %s82, 0
      %s85 = sadd.s32 %s84, 1
      %s86 = scalar_select %p83, %s84, %s85
      %p89 = pneg %p83
      %p90 = scmp.eq.s32.totalorder %s10, 3
      %p91 = por %p89, %p90
      %p92 = scmp.ne.s32.totalorder %s84, %s87
      %p93 = scmp.eq.s32.totalorder %s10, 0
      %p94 = por %p92, %p93
      %p95 = scmp.ne.s32.totalorder %s84, %s87
      %p96 = scmp.eq.s32.totalorder %s15, 3
      %p97 = por %p95, %p96
      %p98 = scmp.ne.s32.totalorder %s87, %s88
      %p99 = scmp.eq.s32.totalorder %s15, 0
      %p100 = por %p98, %p99
      %p101 = scmp.ne.s32.totalorder %s87, %s88
      %p102 = scmp.eq.s32.totalorder %s16, 3
      %p103 = por %p101, %p102
      %p105 = scmp.ne.s32.totalorder %s88, %s104
      %p106 = scmp.eq.s32.totalorder %s16, 0
      %p107 = por %p105, %p106
      %s108 = ssub.s32 %s18, %s25
      %p109 = scmp.eq.s32.totalorder %s108, 0
      %s111 = sadd.s32 %s110, 1
      %s112 = scalar_select %p109, %s110, %s111
      %p115 = pneg %p109
      %p116 = scmp.eq.s32.totalorder %s10, 3
      %p117 = por %p115, %p116
      %p118 = scmp.ne.s32.totalorder %s110, %s113
      %p119 = scmp.eq.s32.totalorder %s10, 0
      %p120 = por %p118, %p119
      %p121 = scmp.ne.s32.totalorder %s110, %s113
      %p122 = scmp.eq.s32.totalorder %s15, 3
      %p123 = por %p121, %p122
      %p124 = scmp.ne.s32.totalorder %s113, %s114
      %p125 = scmp.eq.s32.totalorder %s15, 0
      %p126 = por %p124, %p125
      %p127 = scmp.ne.s32.totalorder %s113, %s114
      %p128 = scmp.eq.s32.totalorder %s16, 3
      %p129 = por %p127, %p128
      %p131 = scmp.ne.s32.totalorder %s114, %s130
      %p132 = scmp.eq.s32.totalorder %s16, 0
      %p133 = por %p131, %p132
      %s134 = ssub.s32 %s17, %s29
      %s135 = ssub.s32 %s18, %s25
      %s136 = sor.u32 %s134, %s135
      %p137 = scmp.eq.s32.totalorder %s136, 0
      %s139 = sadd.s32 %s138, 1
      %s140 = scalar_select %p137, %s138, %s139
      %p143 = pneg %p137
      %p144 = scmp.eq.s32.totalorder %s10, 3
      %p145 = por %p143, %p144
      %p146 = scmp.ne.s32.totalorder %s138, %s141
      %p147 = scmp.eq.s32.totalorder %s10, 0
      %p148 = por %p146, %p147
      %p149 = scmp.ne.s32.totalorder %s138, %s141
      %p150 = scmp.eq.s32.totalorder %s15, 3
      %p151 = por %p149, %p150
      %p152 = scmp.ne.s32.totalorder %s141, %s142
      %p153 = scmp.eq.s32.totalorder %s15, 0
      %p154 = por %p152, %p153
      %p155 = scmp.ne.s32.totalorder %s141, %s142
      %p156 = scmp.eq.s32.totalorder %s16, 3
      %p157 = por %p155, %p156
      %p159 = scmp.ne.s32.totalorder %s142, %s158
      %p160 = scmp.eq.s32.totalorder %s16, 0
      %p161 = por %p159, %p160
      %p162 = scmp.le.s32.totalorder 1, %s10
      %p163 = scmp.lt.s32.totalorder %s10, 5
      %p164 = pnand %p162, %p163
      %p165 = pneg %p164
      // Predicated region
      $region9: #{aspp_module_forward.1} parent=5 // pred_check
        _
      $region10: #{aspp_module_forward.1} parent=5 // pred_check_branch
        %167 = sbr.rel (%p164) target = $region12
      $region11: #{aspp_module_forward.1} parent=5 // pred_region
        %s168 = ssub.s32 %s10, 1
      $region12: #{aspp_module_forward.1} parent=5 // pred_fallthru
        _
      %p169 = scmp.lt.s32.totalorder %s10, 4
      // Predicated region
      $region13: #{aspp_module_forward.1} parent=5 // pred_check
        %p170 = pneg %p169
      $region14: #{aspp_module_forward.1} parent=5 // pred_check_branch
        %172 = sbr.rel (%p170) target = $region16
      $region15: #{aspp_module_forward.1} parent=5 // pred_region
        // Predicated region
        $region17: #{aspp_module_forward.1} parent=15 // pred_check
          %p173 = pneg %p42
        $region18: #{aspp_module_forward.1} parent=15 // pred_check_branch
          %175 = sbr.rel (%p173) target = $region20
        $region19: #{aspp_module_forward.1} parent=15 // pred_region
          %p176 = scmp.lt.s32.totalorder %s17, 1
          %s177 = scalar_select %p176, %s17, 1
          %s178 = smul.addr %s177, 32
          %s179 = smul.addr %s178, 4
          %s180 = scalar_lea.vmem %s0, %s179
        $region20: #{aspp_module_forward.1} parent=15 // pred_fallthru
          _
        // Predicated region
        $region21: #{aspp_module_forward.1} parent=15 // pred_check
          %p181 = pneg %p68
        $region22: #{aspp_module_forward.1} parent=15 // pred_check_branch
          %183 = sbr.rel (%p181) target = $region24
        $region23: #{aspp_module_forward.1} parent=15 // pred_region
          %s184 = sand.u32 %s58, 1
          %s185 = sand.u32 %s58, 1
          %s186 = smul.addr %s185, 64
          %s187 = scalar_lea.vmem [#allocation3], %s186
          %s188 = smul.addr %s18, 4
          %s189 = scalar_lea.vmem %s1, %s188
          // Predicated region
          $region25: #{aspp_module_forward.1} parent=23 // pred_check
            _
          $region26: #{aspp_module_forward.1} parent=23 // pred_check_branch
            %191 = sbr.rel (0) target = $region28
          $region27: #{aspp_module_forward.1} parent=23 // pred_region
            // Predicated region
            $region29: #{aspp_module_forward.1} parent=27 // pred_check
              _
            $region30: #{aspp_module_forward.1} parent=27 // pred_check_branch
              %193 = sbr.rel target = $region32
            $region31: #{aspp_module_forward.1} parent=27 // pred_region
              // Predicated region
              $region44: #{aspp_module_forward.1} parent=31 // pred_check
                _
              $region45: #{aspp_module_forward.1} parent=31 // pred_check_branch
                %238 = sbr.rel (0) target = $region47
              $region46: #{aspp_module_forward.1} parent=31 // pred_region
                loop: start=0, step=1, limit=1
                $region48: #{aspp_module_forward.1} parent=46 // loop_pre_header
                  _
                $region49: #{aspp_module_forward.1} parent=46 // loop_header
                  %s240 = sphi 0, %s244
                  %p241 = scmp.ge.s32.totalorder %s240, 1
                  %s245 = sphi %s189, %s189
                  %s246 = sphi %s187, %s187
                $region50: #{aspp_module_forward.1} parent=46 // loop_header_branch
                  %243 = sbr.rel (%p241) target = $region54
                $region51: #{aspp_module_forward.1} parent=46 // loop_body
                  _
                $region52: #{aspp_module_forward.1} parent=46 // loop_footer
                  %s244 = sadd.s32 1, %s240
                $region53: #{aspp_module_forward.1} parent=46 // loop_footer_branch
                  %239 = sbr.rel target = $region49
                $region54: #{aspp_module_forward.1} parent=46 // loop_exit
                  _
                loop: start=0, step=1, limit=1
                $region55: #{aspp_module_forward.1} parent=46 // loop_pre_header
                  _
                $region56: #{aspp_module_forward.1} parent=46 // loop_header
                  %s249 = sphi 0, %s253
                  %p250 = scmp.ge.s32.totalorder %s249, 1
                  %s254 = sphi %s189, %s189
                  %s255 = sphi %s187, %s187
                $region57: #{aspp_module_forward.1} parent=46 // loop_header_branch
                  %252 = sbr.rel (%p250) target = $region61
                $region58: #{aspp_module_forward.1} parent=46 // loop_body
                  %v256 = vld [vmem:[%s254] sm:$0xf]
                  %257 = vst [vmem:[%s255] sm:$0xf] %v256
                  %v258 = vld [vmem:[%s254 + $0x8] sm:$0xf]
                  %259 = vst [vmem:[%s255 + $0x4] sm:$0xf] %v258
                  %v260 = vld [vmem:[%s254 + $0x10] sm:$0xf]
                  %261 = vst [vmem:[%s255 + $0x8] sm:$0xf] %v260
                  %v262 = vld [vmem:[%s254 + $0x18] sm:$0xf]
                  %263 = vst [vmem:[%s255 + $0xc] sm:$0xf] %v262
                  %v264 = vld [vmem:[%s254 + $0x20] sm:$0xf]
                  %265 = vst [vmem:[%s255 + $0x10] sm:$0xf] %v264
                  %v266 = vld [vmem:[%s254 + $0x28] sm:$0xf]
                  %267 = vst [vmem:[%s255 + $0x14] sm:$0xf] %v266
                  %v268 = vld [vmem:[%s254 + $0x30] sm:$0xf]
                  %269 = vst [vmem:[%s255 + $0x18] sm:$0xf] %v268
                  %v270 = vld [vmem:[%s254 + $0x38] sm:$0xf]
                  %271 = vst [vmem:[%s255 + $0x1c] sm:$0xf] %v270
                  %v272 = vld [vmem:[%s254 + $0x40] sm:$0xf]
                  %273 = vst [vmem:[%s255 + $0x20] sm:$0xf] %v272
                  %v274 = vld [vmem:[%s254 + $0x48] sm:$0xf]
                  %275 = vst [vmem:[%s255 + $0x24] sm:$0xf] %v274
                  %v276 = vld [vmem:[%s254 + $0x50] sm:$0xf]
                  %277 = vst [vmem:[%s255 + $0x28] sm:$0xf] %v276
                  %v278 = vld [vmem:[%s254 + $0x58] sm:$0xf]
                  %279 = vst [vmem:[%s255 + $0x2c] sm:$0xf] %v278
                  %v280 = vld [vmem:[%s254 + $0x60] sm:$0xf]
                  %281 = vst [vmem:[%s255 + $0x30] sm:$0xf] %v280
                  %v282 = vld [vmem:[%s254 + $0x68] sm:$0xf]
                  %283 = vst [vmem:[%s255 + $0x34] sm:$0xf] %v282
                  %v284 = vld [vmem:[%s254 + $0x70] sm:$0xf]
                  %285 = vst [vmem:[%s255 + $0x38] sm:$0xf] %v284
                  %v286 = vld [vmem:[%s254 + $0x78] sm:$0xf]
                  %287 = vst [vmem:[%s255 + $0x3c] sm:$0xf] %v286
                $region59: #{aspp_module_forward.1} parent=46 // loop_footer
                  %s253 = sadd.s32 1, %s249
                $region60: #{aspp_module_forward.1} parent=46 // loop_footer_branch
                  %248 = sbr.rel target = $region56
                $region61: #{aspp_module_forward.1} parent=46 // loop_exit
                  _
              $region47: #{aspp_module_forward.1} parent=31 // pred_fallthru
                _
            $region32: #{aspp_module_forward.1} parent=27 // pred_fallthru
              _
            // Predicated region
            $region33: #{aspp_module_forward.1} parent=27 // pred_check
              _
            $region34: #{aspp_module_forward.1} parent=27 // pred_check_branch
              %195 = sbr.rel (0) target = $region36
            $region35: #{aspp_module_forward.1} parent=27 // pred_region
              loop: start=0, step=1, limit=1
              $region37: #{aspp_module_forward.1} parent=35 // loop_pre_header
                _
              $region38: #{aspp_module_forward.1} parent=35 // loop_header
                %s198 = sphi 0, %s202
                %p199 = scmp.ge.s32.totalorder %s198, 1
                %s203 = sphi %s189, %s189
                %s204 = sphi %s187, %s187
              $region39: #{aspp_module_forward.1} parent=35 // loop_header_branch
                %201 = sbr.rel (%p199) target = $region43
              $region40: #{aspp_module_forward.1} parent=35 // loop_body
                %v205 = vld [vmem:[%s203] sm:$0xf]
                %206 = vst [vmem:[%s204] sm:$0xf] %v205
                %v207 = vld [vmem:[%s203 + $0x8] sm:$0xf]
                %208 = vst [vmem:[%s204 + $0x4] sm:$0xf] %v207
                %v209 = vld [vmem:[%s203 + $0x10] sm:$0xf]
                %210 = vst [vmem:[%s204 + $0x8] sm:$0xf] %v209
                %v211 = vld [vmem:[%s203 + $0x18] sm:$0xf]
                %212 = vst [vmem:[%s204 + $0xc] sm:$0xf] %v211
                %v213 = vld [vmem:[%s203 + $0x20] sm:$0xf]
                %214 = vst [vmem:[%s204 + $0x10] sm:$0xf] %v213
                %v215 = vld [vmem:[%s203 + $0x28] sm:$0xf]
                %216 = vst [vmem:[%s204 + $0x14] sm:$0xf] %v215
                %v217 = vld [vmem:[%s203 + $0x30] sm:$0xf]
                %218 = vst [vmem:[%s204 + $0x18] sm:$0xf] %v217
                %v219 = vld [vmem:[%s203 + $0x38] sm:$0xf]
                %220 = vst [vmem:[%s204 + $0x1c] sm:$0xf] %v219
                %v221 = vld [vmem:[%s203 + $0x40] sm:$0xf]
                %222 = vst [vmem:[%s204 + $0x20] sm:$0xf] %v221
                %v223 = vld [vmem:[%s203 + $0x48] sm:$0xf]
                %224 = vst [vmem:[%s204 + $0x24] sm:$0xf] %v223
                %v225 = vld [vmem:[%s203 + $0x50] sm:$0xf]
                %226 = vst [vmem:[%s204 + $0x28] sm:$0xf] %v225
                %v227 = vld [vmem:[%s203 + $0x58] sm:$0xf]
                %228 = vst [vmem:[%s204 + $0x2c] sm:$0xf] %v227
                %v229 = vld [vmem:[%s203 + $0x60] sm:$0xf]
                %230 = vst [vmem:[%s204 + $0x30] sm:$0xf] %v229
                %v231 = vld [vmem:[%s203 + $0x68] sm:$0xf]
                %232 = vst [vmem:[%s204 + $0x34] sm:$0xf] %v231
                %v233 = vld [vmem:[%s203 + $0x70] sm:$0xf]
                %234 = vst [vmem:[%s204 + $0x38] sm:$0xf] %v233
                %v235 = vld [vmem:[%s203 + $0x78] sm:$0xf]
                %236 = vst [vmem:[%s204 + $0x3c] sm:$0xf] %v235
              $region41: #{aspp_module_forward.1} parent=35 // loop_footer
                %s202 = sadd.s32 1, %s198
              $region42: #{aspp_module_forward.1} parent=35 // loop_footer_branch
                %197 = sbr.rel target = $region38
              $region43: #{aspp_module_forward.1} parent=35 // loop_exit
                _
            $region36: #{aspp_module_forward.1} parent=27 // pred_fallthru
              _
          $region28: #{aspp_module_forward.1} parent=23 // pred_fallthru
            _
          %288 = vnop
        $region24: #{aspp_module_forward.1} parent=15 // pred_fallthru
          _
        // Predicated region
        $region62: #{aspp_module_forward.1} parent=15 // pred_check
          %p289 = pneg %p94
        $region63: #{aspp_module_forward.1} parent=15 // pred_check_branch
          %291 = sbr.rel (%p289) target = $region65
        $region64: #{aspp_module_forward.1} parent=15 // pred_region
          %p292 = scmp.lt.s32.totalorder %s18, 1
          %s293 = scalar_select %p292, %s18, 1
          %s294 = scalar_lea.vmem %s2, %s293
        $region65: #{aspp_module_forward.1} parent=15 // pred_fallthru
          _
        // Predicated region
        $region66: #{aspp_module_forward.1} parent=15 // pred_check
          %p295 = pneg %p120
        $region67: #{aspp_module_forward.1} parent=15 // pred_check_branch
          %297 = sbr.rel (%p295) target = $region69
        $region68: #{aspp_module_forward.1} parent=15 // pred_region
          %p298 = scmp.lt.s32.totalorder %s18, 1
          %s299 = scalar_select %p298, %s18, 1
          %s300 = scalar_lea.vmem %s3, %s299
        $region69: #{aspp_module_forward.1} parent=15 // pred_fallthru
          _
      $region16: #{aspp_module_forward.1} parent=5 // pred_fallthru
        _
      %p301 = scmp.le.s32.totalorder 1, %s10
      %p302 = scmp.lt.s32.totalorder %s10, 5
      %p303 = pnand %p301, %p302
      %p304 = pneg %p303
      // Predicated region
      $region70: #{aspp_module_forward.1} parent=5 // pred_check
        _
      $region71: #{aspp_module_forward.1} parent=5 // pred_check_branch
        %306 = sbr.rel (%p303) target = $region73
      $region72: #{aspp_module_forward.1} parent=5 // pred_region
        %s307 = ssub.s32 %s10, 1
        %s308 = sand.u32 %s61, 1
        %s309 = sand.u32 %s61, 1
        %s310 = smul.addr %s309, 64
        %s311 = scalar_lea.vmem [#allocation3], %s310
        // Predicated region
        $region74: #{aspp_module_forward.1} parent=72 // pred_check
          %p312 = pneg %p74
        $region75: #{aspp_module_forward.1} parent=72 // pred_check_branch
          %314 = sbr.rel (%p312) target = $region77
        $region76: #{aspp_module_forward.1} parent=72 // pred_region
          _
        $region77: #{aspp_module_forward.1} parent=72 // pred_fallthru
          _
        %p315 = scmp.lt.s32.totalorder %s19, 1
        %s316 = scalar_select %p315, %s19, 1
        %s317 = smul.addr %s316, 32
        %s318 = smul.addr %s317, 4
        %s319 = scalar_lea.vmem %s0, %s318
        %p320 = pneg %p48
        %p321 = pneg %p45
        %s322 = sand.u32 %s61, 1
        %s323 = sand.u32 %s61, 1
        %s324 = smul.addr %s323, 64
        %s325 = scalar_lea.vmem [#allocation3], %s324
        %p326 = pneg %p74
        %p327 = pneg %p71
        %p328 = scmp.lt.s32.totalorder %s20, 1
        %s329 = scalar_select %p328, %s20, 1
        %s330 = scalar_lea.vmem %s2, %s329
        %p331 = pneg %p100
        %p332 = pneg %p97
        %p333 = scmp.lt.s32.totalorder %s20, 1
        %s334 = scalar_select %p333, %s20, 1
        %s335 = scalar_lea.vmem %s3, %s334
        %p336 = pneg %p126
        %p337 = pneg %p123
        %p338 = pneg %p154
        %p339 = pneg %p151
        %s340 = sand.u32 %s141, 1
        %s341 = sand.u32 %s141, 1
        %s342 = smul.addr %s341, 128
        %s343 = scalar_lea.vmem [#allocation4], %s342
        %p344 = scmp.lt.s32.totalorder %s19, 1
        %s345 = scalar_select %p344, %s19, 1
        %s346 = smul.addr %s345, 32
        %s347 = smul.addr %s346, 4
        %s348 = scalar_lea.vmem %s0, %s347
        %p349 = scmp.lt.s32.totalorder %s20, 1
        %s350 = scalar_select %p349, %s20, 1
        %s351 = scalar_lea.vmem %s2, %s350
        %p352 = scmp.lt.s32.totalorder %s20, 1
        %s353 = scalar_select %p352, %s20, 1
        %s354 = scalar_lea.vmem %s3, %s353
        %v356 = vld [vmem:[%s348] sm:$0xf]
        %v357 = vld [vmem:[%s348 + $0x4] sm:$0xf]
        %v358 = vld [vmem:[%s348 + $0x8] sm:$0xf]
        %v359 = vld [vmem:[%s348 + $0xc] sm:$0xf]
        %v360 = vld [vmem:[%s348 + $0x10] sm:$0xf]
        %v361 = vld [vmem:[%s348 + $0x14] sm:$0xf]
        %v362 = vld [vmem:[%s348 + $0x18] sm:$0xf]
        %v363 = vld [vmem:[%s348 + $0x1c] sm:$0xf]
        %v364 = vld [vmem:[%s348 + $0x20] sm:$0xf]
        %v365 = vld [vmem:[%s348 + $0x24] sm:$0xf]
        %v366 = vld [vmem:[%s348 + $0x28] sm:$0xf]
        %v367 = vld [vmem:[%s348 + $0x2c] sm:$0xf]
        %v368 = vld [vmem:[%s348 + $0x30] sm:$0xf]
        %v369 = vld [vmem:[%s348 + $0x34] sm:$0xf]
        %v370 = vld [vmem:[%s348 + $0x38] sm:$0xf]
        %v371 = vld [vmem:[%s348 + $0x3c] sm:$0xf]
        %v372 = vld [vmem:[%s348 + $0x40] sm:$0xf]
        %v373 = vld [vmem:[%s348 + $0x44] sm:$0xf]
        %v374 = vld [vmem:[%s348 + $0x48] sm:$0xf]
        %v375 = vld [vmem:[%s348 + $0x4c] sm:$0xf]
        %v376 = vld [vmem:[%s348 + $0x50] sm:$0xf]
        %v377 = vld [vmem:[%s348 + $0x54] sm:$0xf]
        %v378 = vld [vmem:[%s348 + $0x58] sm:$0xf]
        %v379 = vld [vmem:[%s348 + $0x5c] sm:$0xf]
        %v380 = vld [vmem:[%s348 + $0x60] sm:$0xf]
        %v381 = vld [vmem:[%s348 + $0x64] sm:$0xf]
        %v382 = vld [vmem:[%s348 + $0x68] sm:$0xf]
        %v383 = vld [vmem:[%s348 + $0x6c] sm:$0xf]
        %v384 = vld [vmem:[%s348 + $0x70] sm:$0xf]
        %v385 = vld [vmem:[%s348 + $0x74] sm:$0xf]
        %v386 = vld [vmem:[%s348 + $0x78] sm:$0xf]
        %v387 = vld [vmem:[%s348 + $0x7c] sm:$0xf]
        %v388 = vld [vmem:[%s311] sm:$0xf]
        %v389 = vld [vmem:[%s311 + $0x4] sm:$0xf]
        %v390 = vld [vmem:[%s311 + $0x8] sm:$0xf]
        %v391 = vld [vmem:[%s311 + $0xc] sm:$0xf]
        %v392 = vld [vmem:[%s311 + $0x10] sm:$0xf]
        %v393 = vld [vmem:[%s311 + $0x14] sm:$0xf]
        %v394 = vld [vmem:[%s311 + $0x18] sm:$0xf]
        %v395 = vld [vmem:[%s311 + $0x1c] sm:$0xf]
        %v396 = vld [vmem:[%s311 + $0x20] sm:$0xf]
        %v397 = vld [vmem:[%s311 + $0x24] sm:$0xf]
        %v398 = vld [vmem:[%s311 + $0x28] sm:$0xf]
        %v399 = vld [vmem:[%s311 + $0x2c] sm:$0xf]
        %v400 = vld [vmem:[%s311 + $0x30] sm:$0xf]
        %v401 = vld [vmem:[%s311 + $0x34] sm:$0xf]
        %v402 = vld [vmem:[%s311 + $0x38] sm:$0xf]
        %v403 = vld [vmem:[%s311 + $0x3c] sm:$0xf]
        %v436 = vunpack.c.l.b16 %v356
        %v437 = vunpack.c.l.b16 %v357
        %v438 = vunpack.c.l.b16 %v358
        %v439 = vunpack.c.l.b16 %v359
        %v440 = vunpack.c.l.b16 %v360
        %v441 = vunpack.c.l.b16 %v361
        %v442 = vunpack.c.l.b16 %v362
        %v443 = vunpack.c.l.b16 %v363
        %v444 = vunpack.c.l.b16 %v364
        %v445 = vunpack.c.l.b16 %v365
        %v446 = vunpack.c.l.b16 %v366
        %v447 = vunpack.c.l.b16 %v367
        %v448 = vunpack.c.l.b16 %v368
        %v449 = vunpack.c.l.b16 %v369
        %v450 = vunpack.c.l.b16 %v370
        %v451 = vunpack.c.l.b16 %v371
        %v452 = vunpack.c.l.b16 %v372
        %v453 = vunpack.c.l.b16 %v373
        %v454 = vunpack.c.l.b16 %v374
        %v455 = vunpack.c.l.b16 %v375
        %v456 = vunpack.c.l.b16 %v376
        %v457 = vunpack.c.l.b16 %v377
        %v458 = vunpack.c.l.b16 %v378
        %v459 = vunpack.c.l.b16 %v379
        %v460 = vunpack.c.l.b16 %v380
        %v461 = vunpack.c.l.b16 %v381
        %v462 = vunpack.c.l.b16 %v382
        %v463 = vunpack.c.l.b16 %v383
        %v464 = vunpack.c.l.b16 %v384
        %v465 = vunpack.c.l.b16 %v385
        %v466 = vunpack.c.l.b16 %v386
        %v467 = vunpack.c.l.b16 %v387
        %v468 = vpack.c.b16 %v437, %v436
        %v469 = vpack.c.b16 %v439, %v438
        %v470 = vpack.c.b16 %v441, %v440
        %v471 = vpack.c.b16 %v443, %v442
        %v472 = vpack.c.b16 %v445, %v444
        %v473 = vpack.c.b16 %v447, %v446
        %v474 = vpack.c.b16 %v449, %v448
        %v475 = vpack.c.b16 %v451, %v450
        %v476 = vpack.c.b16 %v453, %v452
        %v477 = vpack.c.b16 %v455, %v454
        %v478 = vpack.c.b16 %v457, %v456
        %v479 = vpack.c.b16 %v459, %v458
        %v480 = vpack.c.b16 %v461, %v460
        %v481 = vpack.c.b16 %v463, %v462
        %v482 = vpack.c.b16 %v465, %v464
        %v483 = vpack.c.b16 %v467, %v466
        %v516 = vunpack.c.l.b16 %v388
        %v517 = vunpack.c.l.b16 %v389
        %v518 = vunpack.c.l.b16 %v390
        %v519 = vunpack.c.l.b16 %v391
        %v520 = vunpack.c.l.b16 %v392
        %v521 = vunpack.c.l.b16 %v393
        %v522 = vunpack.c.l.b16 %v394
        %v523 = vunpack.c.l.b16 %v395
        %v524 = vunpack.c.l.b16 %v396
        %v525 = vunpack.c.l.b16 %v397
        %v526 = vunpack.c.l.b16 %v398
        %v527 = vunpack.c.l.b16 %v399
        %v528 = vunpack.c.l.b16 %v400
        %v529 = vunpack.c.l.b16 %v401
        %v530 = vunpack.c.l.b16 %v402
        %v531 = vunpack.c.l.b16 %v403
        %v532 = vpack.c.b16 %v517, %v516
        %v533 = vpack.c.b16 %v519, %v518
        %v534 = vpack.c.b16 %v521, %v520
        %v535 = vpack.c.b16 %v523, %v522
        %v536 = vpack.c.b16 %v525, %v524
        %v537 = vpack.c.b16 %v527, %v526
        %v538 = vpack.c.b16 %v529, %v528
        %v539 = vpack.c.b16 %v531, %v530
        %548 = vmatprep.subr.bf16.mxu0 0
        %549 = vmatpush1.bf16.msra.mxu0 %v532
        %550 = vmatprep.subr.bf16.mxu0 0
        %551 = vmatpush1.bf16.msra.mxu0 %v533
        %552 = vmatprep.subr.bf16.mxu0 0
        %553 = vmatpush1.bf16.msra.mxu0 %v534
        %554 = vmatprep.subr.bf16.mxu0 0
        %555 = vmatpush1.bf16.msra.mxu0 %v535
        %556 = vmatprep.subr.bf16.mxu0 0
        %557 = vmatpush1.bf16.msra.mxu0 %v536
        %558 = vmatprep.subr.bf16.mxu0 0
        %559 = vmatpush1.bf16.msra.mxu0 %v537
        %560 = vmatprep.subr.bf16.mxu0 0
        %561 = vmatpush1.bf16.msra.mxu0 %v538
        %562 = vmatprep.subr.bf16.mxu0 0
        %563 = vmatpush1.bf16.msra.mxu0 %v539
        %564 = vmatprep.subr.bf16.mxu0 0
        %565 = vmatpush1.bf16.msra.mxu0 0
        %566 = vmatprep.subr.bf16.mxu0 0
        %567 = vmatpush1.bf16.msra.mxu0 0
        %568 = vmatprep.subr.bf16.mxu0 0
        %569 = vmatpush1.bf16.msra.mxu0 0
        %570 = vmatprep.subr.bf16.mxu0 0
        %571 = vmatpush1.bf16.msra.mxu0 0
        %572 = vmatprep.subr.bf16.mxu0 0
        %573 = vmatpush1.bf16.msra.mxu0 0
        %574 = vmatprep.subr.bf16.mxu0 0
        %575 = vmatpush1.bf16.msra.mxu0 0
        %576 = vmatprep.subr.bf16.mxu0 0
        %577 = vmatpush1.bf16.msra.mxu0 0
        %578 = vmatprep.subr.bf16.mxu0 0
        %579 = vmatpush1.bf16.msra.mxu0 0
        %580 = vmatprep.mubr.bf16.mxu0 0
        %581 = vmatmul.mubr.bf16.gmra.mrb[0].mxu0 %v468
        %v582 = vpop.f32.mrb[0].mxu0
        %v583 = vadd.f32 0.0, %v582
        %v584 = vpop.f32.mrb[0].mxu0
        %v585 = vpop.f32.mrb[0].mxu0
        %v586 = vadd.f32 0.0, %v585
        %v587 = vpop.f32.mrb[0].mxu0
        %588 = vmatprep.mubr.bf16.mxu0 0
        %589 = vmatmul.mubr.bf16.gmra.mrb[0].mxu0 %v469
        %v590 = vpop.f32.mrb[0].mxu0
        %v591 = vadd.f32 0.0, %v590
        %v592 = vpop.f32.mrb[0].mxu0
        %v593 = vpop.f32.mrb[0].mxu0
        %v594 = vadd.f32 0.0, %v593
        %v595 = vpop.f32.mrb[0].mxu0
        %596 = vmatprep.mubr.bf16.mxu0 0
        %597 = vmatmul.mubr.bf16.gmra.mrb[0].mxu0 %v470
        %v598 = vpop.f32.mrb[0].mxu0
        %v599 = vadd.f32 0.0, %v598
        %v600 = vpop.f32.mrb[0].mxu0
        %v601 = vpop.f32.mrb[0].mxu0
        %v602 = vadd.f32 0.0, %v601
        %v603 = vpop.f32.mrb[0].mxu0
        %604 = vmatprep.mubr.bf16.mxu0 0
        %605 = vmatmul.mubr.bf16.gmra.mrb[0].mxu0 %v471
        %v606 = vpop.f32.mrb[0].mxu0
        %v607 = vadd.f32 0.0, %v606
        %v608 = vpop.f32.mrb[0].mxu0
        %v609 = vpop.f32.mrb[0].mxu0
        %v610 = vadd.f32 0.0, %v609
        %v611 = vpop.f32.mrb[0].mxu0
        %612 = vmatprep.mubr.bf16.mxu0 0
        %613 = vmatmul.mubr.bf16.gmra.mrb[0].mxu0 %v472
        %v614 = vpop.f32.mrb[0].mxu0
        %v615 = vadd.f32 0.0, %v614
        %v616 = vpop.f32.mrb[0].mxu0
        %v617 = vpop.f32.mrb[0].mxu0
        %v618 = vadd.f32 0.0, %v617
        %v619 = vpop.f32.mrb[0].mxu0
        %620 = vmatprep.mubr.bf16.mxu0 0
        %621 = vmatmul.mubr.bf16.gmra.mrb[0].mxu0 %v473
        %v622 = vpop.f32.mrb[0].mxu0
        %v623 = vadd.f32 0.0, %v622
        %v624 = vpop.f32.mrb[0].mxu0
        %v625 = vpop.f32.mrb[0].mxu0
        %v626 = vadd.f32 0.0, %v625
        %v627 = vpop.f32.mrb[0].mxu0
        %628 = vmatprep.mubr.bf16.mxu0 0
        %629 = vmatmul.mubr.bf16.gmra.mrb[0].mxu0 %v474
        %v630 = vpop.f32.mrb[0].mxu0
        %v631 = vadd.f32 0.0, %v630
        %v632 = vpop.f32.mrb[0].mxu0
        %v633 = vpop.f32.mrb[0].mxu0
        %v634 = vadd.f32 0.0, %v633
        %v635 = vpop.f32.mrb[0].mxu0
        %636 = vmatprep.mubr.bf16.mxu0 0
        %637 = vmatmul.mubr.bf16.gmra.mrb[0].mxu0 %v475
        %v638 = vpop.f32.mrb[0].mxu0
        %v639 = vadd.f32 0.0, %v638
        %v640 = vpop.f32.mrb[0].mxu0
        %v641 = vpop.f32.mrb[0].mxu0
        %v642 = vadd.f32 0.0, %v641
        %v643 = vpop.f32.mrb[0].mxu0
        %644 = vmatprep.mubr.bf16.mxu0 0
        %645 = vmatmul.mubr.bf16.gmra.mrb[0].mxu0 %v476
        %v646 = vpop.f32.mrb[0].mxu0
        %v647 = vadd.f32 0.0, %v646
        %v648 = vpop.f32.mrb[0].mxu0
        %v649 = vpop.f32.mrb[0].mxu0
        %v650 = vadd.f32 0.0, %v649
        %v651 = vpop.f32.mrb[0].mxu0
        %652 = vmatprep.mubr.bf16.mxu0 0
        %653 = vmatmul.mubr.bf16.gmra.mrb[0].mxu0 %v477
        %v654 = vpop.f32.mrb[0].mxu0
        %v655 = vadd.f32 0.0, %v654
        %v656 = vpop.f32.mrb[0].mxu0
        %v657 = vpop.f32.mrb[0].mxu0
        %v658 = vadd.f32 0.0, %v657
        %v659 = vpop.f32.mrb[0].mxu0
        %660 = vmatprep.mubr.bf16.mxu0 0
        %661 = vmatmul.mubr.bf16.gmra.mrb[0].mxu0 %v478
        %v662 = vpop.f32.mrb[0].mxu0
        %v663 = vadd.f32 0.0, %v662
        %v664 = vpop.f32.mrb[0].mxu0
        %v665 = vpop.f32.mrb[0].mxu0
        %v666 = vadd.f32 0.0, %v665
        %v667 = vpop.f32.mrb[0].mxu0
        %668 = vmatprep.mubr.bf16.mxu0 0
        %669 = vmatmul.mubr.bf16.gmra.mrb[0].mxu0 %v479
        %v670 = vpop.f32.mrb[0].mxu0
        %v671 = vadd.f32 0.0, %v670
        %v672 = vpop.f32.mrb[0].mxu0
        %v673 = vpop.f32.mrb[0].mxu0
        %v674 = vadd.f32 0.0, %v673
        %v675 = vpop.f32.mrb[0].mxu0
        %676 = vmatprep.mubr.bf16.mxu0 0
        %677 = vmatmul.mubr.bf16.gmra.mrb[0].mxu0 %v480
        %v678 = vpop.f32.mrb[0].mxu0
        %v679 = vadd.f32 0.0, %v678
        %v680 = vpop.f32.mrb[0].mxu0
        %v681 = vpop.f32.mrb[0].mxu0
        %v682 = vadd.f32 0.0, %v681
        %v683 = vpop.f32.mrb[0].mxu0
        %684 = vmatprep.mubr.bf16.mxu0 0
        %685 = vmatmul.mubr.bf16.gmra.mrb[0].mxu0 %v481
        %v686 = vpop.f32.mrb[0].mxu0
        %v687 = vadd.f32 0.0, %v686
        %v688 = vpop.f32.mrb[0].mxu0
        %v689 = vpop.f32.mrb[0].mxu0
        %v690 = vadd.f32 0.0, %v689
        %v691 = vpop.f32.mrb[0].mxu0
        %692 = vmatprep.mubr.bf16.mxu0 0
        %693 = vmatmul.mubr.bf16.gmra.mrb[0].mxu0 %v482
        %v694 = vpop.f32.mrb[0].mxu0
        %v695 = vadd.f32 0.0, %v694
        %v696 = vpop.f32.mrb[0].mxu0
        %v697 = vpop.f32.mrb[0].mxu0
        %v698 = vadd.f32 0.0, %v697
        %v699 = vpop.f32.mrb[0].mxu0
        %700 = vmatprep.mubr.bf16.mxu0 0
        %701 = vmatmul.mubr.bf16.gmra.mrb[0].mxu0 %v483
        %v702 = vpop.f32.mrb[0].mxu0
        %v703 = vadd.f32 0.0, %v702
        %v704 = vpop.f32.mrb[0].mxu0
        %v705 = vpop.f32.mrb[0].mxu0
        %v706 = vadd.f32 0.0, %v705
        %v707 = vpop.f32.mrb[0].mxu0
        %708 = vdwg.mxu0
        %709 = vst [vmem:[#allocation2] sm:$0xff] %v583
        %710 = vst [vmem:[#allocation2 + $0x8] sm:$0xff] %v586
        %711 = vst [vmem:[#allocation2 + $0x10] sm:$0xff] %v591
        %712 = vst [vmem:[#allocation2 + $0x18] sm:$0xff] %v594
        %713 = vst [vmem:[#allocation2 + $0x20] sm:$0xff] %v599
        %714 = vst [vmem:[#allocation2 + $0x28] sm:$0xff] %v602
        %715 = vst [vmem:[#allocation2 + $0x30] sm:$0xff] %v607
        %716 = vst [vmem:[#allocation2 + $0x38] sm:$0xff] %v610
        %717 = vst [vmem:[#allocation2 + $0x40] sm:$0xff] %v615
        %718 = vst [vmem:[#allocation2 + $0x48] sm:$0xff] %v618
        %719 = vst [vmem:[#allocation2 + $0x50] sm:$0xff] %v623
        %720 = vst [vmem:[#allocation2 + $0x58] sm:$0xff] %v626
        %721 = vst [vmem:[#allocation2 + $0x60] sm:$0xff] %v631
        %722 = vst [vmem:[#allocation2 + $0x68] sm:$0xff] %v634
        %723 = vst [vmem:[#allocation2 + $0x70] sm:$0xff] %v639
        %724 = vst [vmem:[#allocation2 + $0x78] sm:$0xff] %v642
        %725 = vst [vmem:[#allocation2 + $0x80] sm:$0xff] %v647
        %726 = vst [vmem:[#allocation2 + $0x88] sm:$0xff] %v650
        %727 = vst [vmem:[#allocation2 + $0x90] sm:$0xff] %v655
        %728 = vst [vmem:[#allocation2 + $0x98] sm:$0xff] %v658
        %729 = vst [vmem:[#allocation2 + $0xa0] sm:$0xff] %v663
        %730 = vst [vmem:[#allocation2 + $0xa8] sm:$0xff] %v666
        %731 = vst [vmem:[#allocation2 + $0xb0] sm:$0xff] %v671
        %732 = vst [vmem:[#allocation2 + $0xb8] sm:$0xff] %v674
        %733 = vst [vmem:[#allocation2 + $0xc0] sm:$0xff] %v679
        %734 = vst [vmem:[#allocation2 + $0xc8] sm:$0xff] %v682
        %735 = vst [vmem:[#allocation2 + $0xd0] sm:$0xff] %v687
        %736 = vst [vmem:[#allocation2 + $0xd8] sm:$0xff] %v690
        %737 = vst [vmem:[#allocation2 + $0xe0] sm:$0xff] %v695
        %738 = vst [vmem:[#allocation2 + $0xe8] sm:$0xff] %v698
        %739 = vst [vmem:[#allocation2 + $0xf0] sm:$0xff] %v703
        %740 = vst [vmem:[#allocation2 + $0xf8] sm:$0xff] %v706
        %v741 = vld [vmem:[#allocation2] sm:$0xff]
        %v742 = vld [vmem:[#allocation2 + $0x8] sm:$0xff]
        %v743 = vld [vmem:[#allocation2 + $0x10] sm:$0xff]
        %v744 = vld [vmem:[#allocation2 + $0x18] sm:$0xff]
        %v745 = vld [vmem:[#allocation2 + $0x20] sm:$0xff]
        %v746 = vld [vmem:[#allocation2 + $0x28] sm:$0xff]
        %v747 = vld [vmem:[#allocation2 + $0x30] sm:$0xff]
        %v748 = vld [vmem:[#allocation2 + $0x38] sm:$0xff]
        %v749 = vld [vmem:[#allocation2 + $0x40] sm:$0xff]
        %v750 = vld [vmem:[#allocation2 + $0x48] sm:$0xff]
        %v751 = vld [vmem:[#allocation2 + $0x50] sm:$0xff]
        %v752 = vld [vmem:[#allocation2 + $0x58] sm:$0xff]
        %v753 = vld [vmem:[#allocation2 + $0x60] sm:$0xff]
        %v754 = vld [vmem:[#allocation2 + $0x68] sm:$0xff]
        %v755 = vld [vmem:[#allocation2 + $0x70] sm:$0xff]
        %v756 = vld [vmem:[#allocation2 + $0x78] sm:$0xff]
        %v757 = vld [vmem:[#allocation2 + $0x80] sm:$0xff]
        %v758 = vld [vmem:[#allocation2 + $0x88] sm:$0xff]
        %v759 = vld [vmem:[#allocation2 + $0x90] sm:$0xff]
        %v760 = vld [vmem:[#allocation2 + $0x98] sm:$0xff]
        %v761 = vld [vmem:[#allocation2 + $0xa0] sm:$0xff]
        %v762 = vld [vmem:[#allocation2 + $0xa8] sm:$0xff]
        %v763 = vld [vmem:[#allocation2 + $0xb0] sm:$0xff]
        %v764 = vld [vmem:[#allocation2 + $0xb8] sm:$0xff]
        %v765 = vld [vmem:[#allocation2 + $0xc0] sm:$0xff]
        %v766 = vld [vmem:[#allocation2 + $0xc8] sm:$0xff]
        %v767 = vld [vmem:[#allocation2 + $0xd0] sm:$0xff]
        %v768 = vld [vmem:[#allocation2 + $0xd8] sm:$0xff]
        %v769 = vld [vmem:[#allocation2 + $0xe0] sm:$0xff]
        %v770 = vld [vmem:[#allocation2 + $0xe8] sm:$0xff]
        %v771 = vld [vmem:[#allocation2 + $0xf0] sm:$0xff]
        %v772 = vld [vmem:[#allocation2 + $0xf8] sm:$0xff]
        %v773 = vld [vmem:[%s351] sm:$0x1]
        %v775 = vlaneseq
        %v776 = vshrl.u32 %v775, 7
        %v777 = vsub.s32 0, %v776
        %v778 = vrot.slane %v773, %v777
        %v780 = vmul.f32 %v741, %v778
        %v781 = vmul.f32 %v742, %v778
        %v782 = vmul.f32 %v743, %v778
        %v783 = vmul.f32 %v744, %v778
        %v784 = vmul.f32 %v745, %v778
        %v785 = vmul.f32 %v746, %v778
        %v786 = vmul.f32 %v747, %v778
        %v787 = vmul.f32 %v748, %v778
        %v788 = vmul.f32 %v749, %v778
        %v789 = vmul.f32 %v750, %v778
        %v790 = vmul.f32 %v751, %v778
        %v791 = vmul.f32 %v752, %v778
        %v792 = vmul.f32 %v753, %v778
        %v793 = vmul.f32 %v754, %v778
        %v794 = vmul.f32 %v755, %v778
        %v795 = vmul.f32 %v756, %v778
        %v796 = vmul.f32 %v757, %v778
        %v797 = vmul.f32 %v758, %v778
        %v798 = vmul.f32 %v759, %v778
        %v799 = vmul.f32 %v760, %v778
        %v800 = vmul.f32 %v761, %v778
        %v801 = vmul.f32 %v762, %v778
        %v802 = vmul.f32 %v763, %v778
        %v803 = vmul.f32 %v764, %v778
        %v804 = vmul.f32 %v765, %v778
        %v805 = vmul.f32 %v766, %v778
        %v806 = vmul.f32 %v767, %v778
        %v807 = vmul.f32 %v768, %v778
        %v808 = vmul.f32 %v769, %v778
        %v809 = vmul.f32 %v770, %v778
        %v810 = vmul.f32 %v771, %v778
        %v811 = vmul.f32 %v772, %v778
        %v812 = vld [vmem:[%s354] sm:$0x1]
        %v814 = vlaneseq
        %v815 = vshrl.u32 %v814, 7
        %v816 = vsub.s32 0, %v815
        %v817 = vrot.slane %v812, %v816
        %v819 = vadd.f32 %v780, %v817
        %v820 = vadd.f32 %v781, %v817
        %v821 = vadd.f32 %v782, %v817
        %v822 = vadd.f32 %v783, %v817
        %v823 = vadd.f32 %v784, %v817
        %v824 = vadd.f32 %v785, %v817
        %v825 = vadd.f32 %v786, %v817
        %v826 = vadd.f32 %v787, %v817
        %v827 = vadd.f32 %v788, %v817
        %v828 = vadd.f32 %v789, %v817
        %v829 = vadd.f32 %v790, %v817
        %v830 = vadd.f32 %v791, %v817
        %v831 = vadd.f32 %v792, %v817
        %v832 = vadd.f32 %v793, %v817
        %v833 = vadd.f32 %v794, %v817
        %v834 = vadd.f32 %v795, %v817
        %v835 = vadd.f32 %v796, %v817
        %v836 = vadd.f32 %v797, %v817
        %v837 = vadd.f32 %v798, %v817
        %v838 = vadd.f32 %v799, %v817
        %v839 = vadd.f32 %v800, %v817
        %v840 = vadd.f32 %v801, %v817
        %v841 = vadd.f32 %v802, %v817
        %v842 = vadd.f32 %v803, %v817
        %v843 = vadd.f32 %v804, %v817
        %v844 = vadd.f32 %v805, %v817
        %v845 = vadd.f32 %v806, %v817
        %v846 = vadd.f32 %v807, %v817
        %v847 = vadd.f32 %v808, %v817
        %v848 = vadd.f32 %v809, %v817
        %v849 = vadd.f32 %v810, %v817
        %v850 = vadd.f32 %v811, %v817
        %v851 = vmax.f32 %v819, 0.0
        %v852 = vmax.f32 %v820, 0.0
        %v853 = vmax.f32 %v821, 0.0
        %v854 = vmax.f32 %v822, 0.0
        %v855 = vmax.f32 %v823, 0.0
        %v856 = vmax.f32 %v824, 0.0
        %v857 = vmax.f32 %v825, 0.0
        %v858 = vmax.f32 %v826, 0.0
        %v859 = vmax.f32 %v827, 0.0
        %v860 = vmax.f32 %v828, 0.0
        %v861 = vmax.f32 %v829, 0.0
        %v862 = vmax.f32 %v830, 0.0
        %v863 = vmax.f32 %v831, 0.0
        %v864 = vmax.f32 %v832, 0.0
        %v865 = vmax.f32 %v833, 0.0
        %v866 = vmax.f32 %v834, 0.0
        %v867 = vmax.f32 %v835, 0.0
        %v868 = vmax.f32 %v836, 0.0
        %v869 = vmax.f32 %v837, 0.0
        %v870 = vmax.f32 %v838, 0.0
        %v871 = vmax.f32 %v839, 0.0
        %v872 = vmax.f32 %v840, 0.0
        %v873 = vmax.f32 %v841, 0.0
        %v874 = vmax.f32 %v842, 0.0
        %v875 = vmax.f32 %v843, 0.0
        %v876 = vmax.f32 %v844, 0.0
        %v877 = vmax.f32 %v845, 0.0
        %v878 = vmax.f32 %v846, 0.0
        %v879 = vmax.f32 %v847, 0.0
        %v880 = vmax.f32 %v848, 0.0
        %v881 = vmax.f32 %v849, 0.0
        %v882 = vmax.f32 %v850, 0.0
        %v883 = vpack.c.bf16 %v852, %v851
        %v884 = vpack.c.bf16 %v854, %v853
        %v885 = vpack.c.bf16 %v856, %v855
        %v886 = vpack.c.bf16 %v858, %v857
        %v887 = vpack.c.bf16 %v860, %v859
        %v888 = vpack.c.bf16 %v862, %v861
        %v889 = vpack.c.bf16 %v864, %v863
        %v890 = vpack.c.bf16 %v866, %v865
        %v891 = vpack.c.bf16 %v868, %v867
        %v892 = vpack.c.bf16 %v870, %v869
        %v893 = vpack.c.bf16 %v872, %v871
        %v894 = vpack.c.bf16 %v874, %v873
        %v895 = vpack.c.bf16 %v876, %v875
        %v896 = vpack.c.bf16 %v878, %v877
        %v897 = vpack.c.bf16 %v880, %v879
        %v898 = vpack.c.bf16 %v882, %v881
        %v915 = vunpack.c.l.b16 %v883
        %v916 = vunpack.c.h.b16 %v883
        %v917 = vunpack.c.l.b16 %v884
        %v918 = vunpack.c.h.b16 %v884
        %v919 = vunpack.c.l.b16 %v885
        %v920 = vunpack.c.h.b16 %v885
        %v921 = vunpack.c.l.b16 %v886
        %v922 = vunpack.c.h.b16 %v886
        %v923 = vunpack.c.l.b16 %v887
        %v924 = vunpack.c.h.b16 %v887
        %v925 = vunpack.c.l.b16 %v888
        %v926 = vunpack.c.h.b16 %v888
        %v927 = vunpack.c.l.b16 %v889
        %v928 = vunpack.c.h.b16 %v889
        %v929 = vunpack.c.l.b16 %v890
        %v930 = vunpack.c.h.b16 %v890
        %v931 = vunpack.c.l.b16 %v891
        %v932 = vunpack.c.h.b16 %v891
        %v933 = vunpack.c.l.b16 %v892
        %v934 = vunpack.c.h.b16 %v892
        %v935 = vunpack.c.l.b16 %v893
        %v936 = vunpack.c.h.b16 %v893
        %v937 = vunpack.c.l.b16 %v894
        %v938 = vunpack.c.h.b16 %v894
        %v939 = vunpack.c.l.b16 %v895
        %v940 = vunpack.c.h.b16 %v895
        %v941 = vunpack.c.l.b16 %v896
        %v942 = vunpack.c.h.b16 %v896
        %v943 = vunpack.c.l.b16 %v897
        %v944 = vunpack.c.h.b16 %v897
        %v945 = vunpack.c.l.b16 %v898
        %v946 = vunpack.c.h.b16 %v898
        %v947 = vpack.c.b16 %v915, %v915
        %v948 = vpack.c.b16 %v916, %v916
        %v949 = vpack.c.b16 %v917, %v917
        %v950 = vpack.c.b16 %v918, %v918
        %v951 = vpack.c.b16 %v919, %v919
        %v952 = vpack.c.b16 %v920, %v920
        %v953 = vpack.c.b16 %v921, %v921
        %v954 = vpack.c.b16 %v922, %v922
        %v955 = vpack.c.b16 %v923, %v923
        %v956 = vpack.c.b16 %v924, %v924
        %v957 = vpack.c.b16 %v925, %v925
        %v958 = vpack.c.b16 %v926, %v926
        %v959 = vpack.c.b16 %v927, %v927
        %v960 = vpack.c.b16 %v928, %v928
        %v961 = vpack.c.b16 %v929, %v929
        %v962 = vpack.c.b16 %v930, %v930
        %v963 = vpack.c.b16 %v931, %v931
        %v964 = vpack.c.b16 %v932, %v932
        %v965 = vpack.c.b16 %v933, %v933
        %v966 = vpack.c.b16 %v934, %v934
        %v967 = vpack.c.b16 %v935, %v935
        %v968 = vpack.c.b16 %v936, %v936
        %v969 = vpack.c.b16 %v937, %v937
        %v970 = vpack.c.b16 %v938, %v938
        %v971 = vpack.c.b16 %v939, %v939
        %v972 = vpack.c.b16 %v940, %v940
        %v973 = vpack.c.b16 %v941, %v941
        %v974 = vpack.c.b16 %v942, %v942
        %v975 = vpack.c.b16 %v943, %v943
        %v976 = vpack.c.b16 %v944, %v944
        %v977 = vpack.c.b16 %v945, %v945
        %v978 = vpack.c.b16 %v946, %v946
        %1011 = vst [vmem:[%s343] sm:$0xf] %v947
        %1012 = vst [vmem:[%s343 + $0x4] sm:$0xf] %v948
        %1013 = vst [vmem:[%s343 + $0x8] sm:$0xf] %v949
        %1014 = vst [vmem:[%s343 + $0xc] sm:$0xf] %v950
        %1015 = vst [vmem:[%s343 + $0x10] sm:$0xf] %v951
        %1016 = vst [vmem:[%s343 + $0x14] sm:$0xf] %v952
        %1017 = vst [vmem:[%s343 + $0x18] sm:$0xf] %v953
        %1018 = vst [vmem:[%s343 + $0x1c] sm:$0xf] %v954
        %1019 = vst [vmem:[%s343 + $0x20] sm:$0xf] %v955
        %1020 = vst [vmem:[%s343 + $0x24] sm:$0xf] %v956
        %1021 = vst [vmem:[%s343 + $0x28] sm:$0xf] %v957
        %1022 = vst [vmem:[%s343 + $0x2c] sm:$0xf] %v958
        %1023 = vst [vmem:[%s343 + $0x30] sm:$0xf] %v959
        %1024 = vst [vmem:[%s343 + $0x34] sm:$0xf] %v960
        %1025 = vst [vmem:[%s343 + $0x38] sm:$0xf] %v961
        %1026 = vst [vmem:[%s343 + $0x3c] sm:$0xf] %v962
        %1027 = vst [vmem:[%s343 + $0x40] sm:$0xf] %v963
        %1028 = vst [vmem:[%s343 + $0x44] sm:$0xf] %v964
        %1029 = vst [vmem:[%s343 + $0x48] sm:$0xf] %v965
        %1030 = vst [vmem:[%s343 + $0x4c] sm:$0xf] %v966
        %1031 = vst [vmem:[%s343 + $0x50] sm:$0xf] %v967
        %1032 = vst [vmem:[%s343 + $0x54] sm:$0xf] %v968
        %1033 = vst [vmem:[%s343 + $0x58] sm:$0xf] %v969
        %1034 = vst [vmem:[%s343 + $0x5c] sm:$0xf] %v970
        %1035 = vst [vmem:[%s343 + $0x60] sm:$0xf] %v971
        %1036 = vst [vmem:[%s343 + $0x64] sm:$0xf] %v972
        %1037 = vst [vmem:[%s343 + $0x68] sm:$0xf] %v973
        %1038 = vst [vmem:[%s343 + $0x6c] sm:$0xf] %v974
        %1039 = vst [vmem:[%s343 + $0x70] sm:$0xf] %v975
        %1040 = vst [vmem:[%s343 + $0x74] sm:$0xf] %v976
        %1041 = vst [vmem:[%s343 + $0x78] sm:$0xf] %v977
        %1042 = vst [vmem:[%s343 + $0x7c] sm:$0xf] %v978
        %s1043 = sand.u32 %s141, 1
        %s1044 = sand.u32 %s141, 1
        %s1045 = smul.addr %s1044, 128
        %s1046 = scalar_lea.vmem [#allocation4], %s1045
        // Predicated region
        $region78: #{aspp_module_forward.1} parent=72 // pred_check
          %p1047 = pneg %p151
        $region79: #{aspp_module_forward.1} parent=72 // pred_check_branch
          %1049 = sbr.rel (%p1047) target = $region81
        $region80: #{aspp_module_forward.1} parent=72 // pred_region
          %s1050 = smul.addr %s19, 64
          %s1051 = sadd.s32 %s20, %s1050
          %s1052 = smul.addr %s1051, 4
          %s1053 = scalar_lea.vmem %s4, %s1052
          // Predicated region
          $region82: #{aspp_module_forward.1} parent=80 // pred_check
            _
          $region83: #{aspp_module_forward.1} parent=80 // pred_check_branch
            %1055 = sbr.rel (0) target = $region85
          $region84: #{aspp_module_forward.1} parent=80 // pred_region
            // Predicated region
            $region86: #{aspp_module_forward.1} parent=84 // pred_check
              _
            $region87: #{aspp_module_forward.1} parent=84 // pred_check_branch
              %1057 = sbr.rel target = $region89
            $region88: #{aspp_module_forward.1} parent=84 // pred_region
              // Predicated region
              $region101: #{aspp_module_forward.1} parent=88 // pred_check
                _
              $region102: #{aspp_module_forward.1} parent=88 // pred_check_branch
                %1134 = sbr.rel (0) target = $region104
              $region103: #{aspp_module_forward.1} parent=88 // pred_region
                loop: start=0, step=1, limit=1
                $region105: #{aspp_module_forward.1} parent=103 // loop_pre_header
                  _
                $region106: #{aspp_module_forward.1} parent=103 // loop_header
                  %s1136 = sphi 0, %s1140
                  %p1137 = scmp.ge.s32.totalorder %s1136, 1
                  %s1141 = sphi %s1046, %s1046
                  %s1142 = sphi %s1053, %s1053
                $region107: #{aspp_module_forward.1} parent=103 // loop_header_branch
                  %1139 = sbr.rel (%p1137) target = $region111
                $region108: #{aspp_module_forward.1} parent=103 // loop_body
                  _
                $region109: #{aspp_module_forward.1} parent=103 // loop_footer
                  %s1140 = sadd.s32 1, %s1136
                $region110: #{aspp_module_forward.1} parent=103 // loop_footer_branch
                  %1135 = sbr.rel target = $region106
                $region111: #{aspp_module_forward.1} parent=103 // loop_exit
                  _
                loop: start=0, step=1, limit=1
                $region112: #{aspp_module_forward.1} parent=103 // loop_pre_header
                  _
                $region113: #{aspp_module_forward.1} parent=103 // loop_header
                  %s1145 = sphi 0, %s1149
                  %p1146 = scmp.ge.s32.totalorder %s1145, 1
                  %s1150 = sphi %s1046, %s1046
                  %s1151 = sphi %s1053, %s1053
                $region114: #{aspp_module_forward.1} parent=103 // loop_header_branch
                  %1148 = sbr.rel (%p1146) target = $region118
                $region115: #{aspp_module_forward.1} parent=103 // loop_body
                  %v1152 = vld [vmem:[%s1150] sm:$0xf]
                  %1153 = vst [vmem:[%s1151] sm:$0xf] %v1152
                  %v1154 = vld [vmem:[%s1150 + $0x4] sm:$0xf]
                  %1155 = vst [vmem:[%s1151 + $0x8] sm:$0xf] %v1154
                  %v1156 = vld [vmem:[%s1150 + $0x8] sm:$0xf]
                  %1157 = vst [vmem:[%s1151 + $0x10] sm:$0xf] %v1156
                  %v1158 = vld [vmem:[%s1150 + $0xc] sm:$0xf]
                  %1159 = vst [vmem:[%s1151 + $0x18] sm:$0xf] %v1158
                  %v1160 = vld [vmem:[%s1150 + $0x10] sm:$0xf]
                  %1161 = vst [vmem:[%s1151 + $0x20] sm:$0xf] %v1160
                  %v1162 = vld [vmem:[%s1150 + $0x14] sm:$0xf]
                  %1163 = vst [vmem:[%s1151 + $0x28] sm:$0xf] %v1162
                  %v1164 = vld [vmem:[%s1150 + $0x18] sm:$0xf]
                  %1165 = vst [vmem:[%s1151 + $0x30] sm:$0xf] %v1164
                  %v1166 = vld [vmem:[%s1150 + $0x1c] sm:$0xf]
                  %1167 = vst [vmem:[%s1151 + $0x38] sm:$0xf] %v1166
                  %v1168 = vld [vmem:[%s1150 + $0x20] sm:$0xf]
                  %1169 = vst [vmem:[%s1151 + $0x40] sm:$0xf] %v1168
                  %v1170 = vld [vmem:[%s1150 + $0x24] sm:$0xf]
                  %1171 = vst [vmem:[%s1151 + $0x48] sm:$0xf] %v1170
                  %v1172 = vld [vmem:[%s1150 + $0x28] sm:$0xf]
                  %1173 = vst [vmem:[%s1151 + $0x50] sm:$0xf] %v1172
                  %v1174 = vld [vmem:[%s1150 + $0x2c] sm:$0xf]
                  %1175 = vst [vmem:[%s1151 + $0x58] sm:$0xf] %v1174
                  %v1176 = vld [vmem:[%s1150 + $0x30] sm:$0xf]
                  %1177 = vst [vmem:[%s1151 + $0x60] sm:$0xf] %v1176
                  %v1178 = vld [vmem:[%s1150 + $0x34] sm:$0xf]
                  %1179 = vst [vmem:[%s1151 + $0x68] sm:$0xf] %v1178
                  %v1180 = vld [vmem:[%s1150 + $0x38] sm:$0xf]
                  %1181 = vst [vmem:[%s1151 + $0x70] sm:$0xf] %v1180
                  %v1182 = vld [vmem:[%s1150 + $0x3c] sm:$0xf]
                  %1183 = vst [vmem:[%s1151 + $0x78] sm:$0xf] %v1182
                  %v1184 = vld [vmem:[%s1150 + $0x40] sm:$0xf]
                  %1185 = vst [vmem:[%s1151 + $0x80] sm:$0xf] %v1184
                  %v1186 = vld [vmem:[%s1150 + $0x44] sm:$0xf]
                  %1187 = vst [vmem:[%s1151 + $0x88] sm:$0xf] %v1186
                  %v1188 = vld [vmem:[%s1150 + $0x48] sm:$0xf]
                  %1189 = vst [vmem:[%s1151 + $0x90] sm:$0xf] %v1188
                  %v1190 = vld [vmem:[%s1150 + $0x4c] sm:$0xf]
                  %1191 = vst [vmem:[%s1151 + $0x98] sm:$0xf] %v1190
                  %v1192 = vld [vmem:[%s1150 + $0x50] sm:$0xf]
                  %1193 = vst [vmem:[%s1151 + $0xa0] sm:$0xf] %v1192
                  %v1194 = vld [vmem:[%s1150 + $0x54] sm:$0xf]
                  %1195 = vst [vmem:[%s1151 + $0xa8] sm:$0xf] %v1194
                  %v1196 = vld [vmem:[%s1150 + $0x58] sm:$0xf]
                  %1197 = vst [vmem:[%s1151 + $0xb0] sm:$0xf] %v1196
                  %v1198 = vld [vmem:[%s1150 + $0x5c] sm:$0xf]
                  %1199 = vst [vmem:[%s1151 + $0xb8] sm:$0xf] %v1198
                  %v1200 = vld [vmem:[%s1150 + $0x60] sm:$0xf]
                  %1201 = vst [vmem:[%s1151 + $0xc0] sm:$0xf] %v1200
                  %v1202 = vld [vmem:[%s1150 + $0x64] sm:$0xf]
                  %1203 = vst [vmem:[%s1151 + $0xc8] sm:$0xf] %v1202
                  %v1204 = vld [vmem:[%s1150 + $0x68] sm:$0xf]
                  %1205 = vst [vmem:[%s1151 + $0xd0] sm:$0xf] %v1204
                  %v1206 = vld [vmem:[%s1150 + $0x6c] sm:$0xf]
                  %1207 = vst [vmem:[%s1151 + $0xd8] sm:$0xf] %v1206
                  %v1208 = vld [vmem:[%s1150 + $0x70] sm:$0xf]
                  %1209 = vst [vmem:[%s1151 + $0xe0] sm:$0xf] %v1208
                  %v1210 = vld [vmem:[%s1150 + $0x74] sm:$0xf]
                  %1211 = vst [vmem:[%s1151 + $0xe8] sm:$0xf] %v1210
                  %v1212 = vld [vmem:[%s1150 + $0x78] sm:$0xf]
                  %1213 = vst [vmem:[%s1151 + $0xf0] sm:$0xf] %v1212
                  %v1214 = vld [vmem:[%s1150 + $0x7c] sm:$0xf]
                  %1215 = vst [vmem:[%s1151 + $0xf8] sm:$0xf] %v1214
                $region116: #{aspp_module_forward.1} parent=103 // loop_footer
                  %s1149 = sadd.s32 1, %s1145
                $region117: #{aspp_module_forward.1} parent=103 // loop_footer_branch
                  %1144 = sbr.rel target = $region113
                $region118: #{aspp_module_forward.1} parent=103 // loop_exit
                  _
              $region104: #{aspp_module_forward.1} parent=88 // pred_fallthru
                _
            $region89: #{aspp_module_forward.1} parent=84 // pred_fallthru
              _
            // Predicated region
            $region90: #{aspp_module_forward.1} parent=84 // pred_check
              _
            $region91: #{aspp_module_forward.1} parent=84 // pred_check_branch
              %1059 = sbr.rel (0) target = $region93
            $region92: #{aspp_module_forward.1} parent=84 // pred_region
              loop: start=0, step=1, limit=1
              $region94: #{aspp_module_forward.1} parent=92 // loop_pre_header
                _
              $region95: #{aspp_module_forward.1} parent=92 // loop_header
                %s1062 = sphi 0, %s1066
                %p1063 = scmp.ge.s32.totalorder %s1062, 1
                %s1067 = sphi %s1046, %s1046
                %s1068 = sphi %s1053, %s1053
              $region96: #{aspp_module_forward.1} parent=92 // loop_header_branch
                %1065 = sbr.rel (%p1063) target = $region100
              $region97: #{aspp_module_forward.1} parent=92 // loop_body
                %v1069 = vld [vmem:[%s1067] sm:$0xf]
                %1070 = vst [vmem:[%s1068] sm:$0xf] %v1069
                %v1071 = vld [vmem:[%s1067 + $0x4] sm:$0xf]
                %1072 = vst [vmem:[%s1068 + $0x8] sm:$0xf] %v1071
                %v1073 = vld [vmem:[%s1067 + $0x8] sm:$0xf]
                %1074 = vst [vmem:[%s1068 + $0x10] sm:$0xf] %v1073
                %v1075 = vld [vmem:[%s1067 + $0xc] sm:$0xf]
                %1076 = vst [vmem:[%s1068 + $0x18] sm:$0xf] %v1075
                %v1077 = vld [vmem:[%s1067 + $0x10] sm:$0xf]
                %1078 = vst [vmem:[%s1068 + $0x20] sm:$0xf] %v1077
                %v1079 = vld [vmem:[%s1067 + $0x14] sm:$0xf]
                %1080 = vst [vmem:[%s1068 + $0x28] sm:$0xf] %v1079
                %v1081 = vld [vmem:[%s1067 + $0x18] sm:$0xf]
                %1082 = vst [vmem:[%s1068 + $0x30] sm:$0xf] %v1081
                %v1083 = vld [vmem:[%s1067 + $0x1c] sm:$0xf]
                %1084 = vst [vmem:[%s1068 + $0x38] sm:$0xf] %v1083
                %v1085 = vld [vmem:[%s1067 + $0x20] sm:$0xf]
                %1086 = vst [vmem:[%s1068 + $0x40] sm:$0xf] %v1085
                %v1087 = vld [vmem:[%s1067 + $0x24] sm:$0xf]
                %1088 = vst [vmem:[%s1068 + $0x48] sm:$0xf] %v1087
                %v1089 = vld [vmem:[%s1067 + $0x28] sm:$0xf]
                %1090 = vst [vmem:[%s1068 + $0x50] sm:$0xf] %v1089
                %v1091 = vld [vmem:[%s1067 + $0x2c] sm:$0xf]
                %1092 = vst [vmem:[%s1068 + $0x58] sm:$0xf] %v1091
                %v1093 = vld [vmem:[%s1067 + $0x30] sm:$0xf]
                %1094 = vst [vmem:[%s1068 + $0x60] sm:$0xf] %v1093
                %v1095 = vld [vmem:[%s1067 + $0x34] sm:$0xf]
                %1096 = vst [vmem:[%s1068 + $0x68] sm:$0xf] %v1095
                %v1097 = vld [vmem:[%s1067 + $0x38] sm:$0xf]
                %1098 = vst [vmem:[%s1068 + $0x70] sm:$0xf] %v1097
                %v1099 = vld [vmem:[%s1067 + $0x3c] sm:$0xf]
                %1100 = vst [vmem:[%s1068 + $0x78] sm:$0xf] %v1099
                %v1101 = vld [vmem:[%s1067 + $0x40] sm:$0xf]
                %1102 = vst [vmem:[%s1068 + $0x80] sm:$0xf] %v1101
                %v1103 = vld [vmem:[%s1067 + $0x44] sm:$0xf]
                %1104 = vst [vmem:[%s1068 + $0x88] sm:$0xf] %v1103
                %v1105 = vld [vmem:[%s1067 + $0x48] sm:$0xf]
                %1106 = vst [vmem:[%s1068 + $0x90] sm:$0xf] %v1105
                %v1107 = vld [vmem:[%s1067 + $0x4c] sm:$0xf]
                %1108 = vst [vmem:[%s1068 + $0x98] sm:$0xf] %v1107
                %v1109 = vld [vmem:[%s1067 + $0x50] sm:$0xf]
                %1110 = vst [vmem:[%s1068 + $0xa0] sm:$0xf] %v1109
                %v1111 = vld [vmem:[%s1067 + $0x54] sm:$0xf]
                %1112 = vst [vmem:[%s1068 + $0xa8] sm:$0xf] %v1111
                %v1113 = vld [vmem:[%s1067 + $0x58] sm:$0xf]
                %1114 = vst [vmem:[%s1068 + $0xb0] sm:$0xf] %v1113
                %v1115 = vld [vmem:[%s1067 + $0x5c] sm:$0xf]
                %1116 = vst [vmem:[%s1068 + $0xb8] sm:$0xf] %v1115
                %v1117 = vld [vmem:[%s1067 + $0x60] sm:$0xf]
                %1118 = vst [vmem:[%s1068 + $0xc0] sm:$0xf] %v1117
                %v1119 = vld [vmem:[%s1067 + $0x64] sm:$0xf]
                %1120 = vst [vmem:[%s1068 + $0xc8] sm:$0xf] %v1119
                %v1121 = vld [vmem:[%s1067 + $0x68] sm:$0xf]
                %1122 = vst [vmem:[%s1068 + $0xd0] sm:$0xf] %v1121
                %v1123 = vld [vmem:[%s1067 + $0x6c] sm:$0xf]
                %1124 = vst [vmem:[%s1068 + $0xd8] sm:$0xf] %v1123
                %v1125 = vld [vmem:[%s1067 + $0x70] sm:$0xf]
                %1126 = vst [vmem:[%s1068 + $0xe0] sm:$0xf] %v1125
                %v1127 = vld [vmem:[%s1067 + $0x74] sm:$0xf]
                %1128 = vst [vmem:[%s1068 + $0xe8] sm:$0xf] %v1127
                %v1129 = vld [vmem:[%s1067 + $0x78] sm:$0xf]
                %1130 = vst [vmem:[%s1068 + $0xf0] sm:$0xf] %v1129
                %v1131 = vld [vmem:[%s1067 + $0x7c] sm:$0xf]
                %1132 = vst [vmem:[%s1068 + $0xf8] sm:$0xf] %v1131
              $region98: #{aspp_module_forward.1} parent=92 // loop_footer
                %s1066 = sadd.s32 1, %s1062
              $region99: #{aspp_module_forward.1} parent=92 // loop_footer_branch
                %1061 = sbr.rel target = $region95
              $region100: #{aspp_module_forward.1} parent=92 // loop_exit
                _
            $region93: #{aspp_module_forward.1} parent=84 // pred_fallthru
              _
          $region85: #{aspp_module_forward.1} parent=80 // pred_fallthru
            _
          %1216 = vnop
        $region81: #{aspp_module_forward.1} parent=72 // pred_fallthru
          _
      $region73: #{aspp_module_forward.1} parent=5 // pred_fallthru
        _
      %p1217 = scmp.le.s32.totalorder 2, %s10
      // Predicated region
      $region119: #{aspp_module_forward.1} parent=5 // pred_check
        %p1218 = pneg %p1217
      $region120: #{aspp_module_forward.1} parent=5 // pred_check_branch
        %1220 = sbr.rel (%p1218) target = $region122
      $region121: #{aspp_module_forward.1} parent=5 // pred_region
        %s1221 = ssub.s32 %s10, 2
        // Predicated region
        $region123: #{aspp_module_forward.1} parent=121 // pred_check
          %p1222 = pneg %p157
        $region124: #{aspp_module_forward.1} parent=121 // pred_check_branch
          %1224 = sbr.rel (%p1222) target = $region126
        $region125: #{aspp_module_forward.1} parent=121 // pred_region
          %s1225 = sand.u32 %s142, 1
          %s1226 = sand.u32 %s142, 1
          %s1227 = smul.addr %s1226, 128
          %s1228 = scalar_lea.vmem [#allocation4], %s1227
        $region126: #{aspp_module_forward.1} parent=121 // pred_fallthru
          _
      $region122: #{aspp_module_forward.1} parent=5 // pred_fallthru
        _
    $region6: #{aspp_module_forward.1} parent=1 // loop_footer
      %s14 = sadd.s32 1, %s10
    $region7: #{aspp_module_forward.1} parent=1 // loop_footer_branch
      %9 = sbr.rel target = $region3
    $region8: #{aspp_module_forward.1} parent=1 // loop_exit
      _

</llo_original>
